<compile_context>
chip_gen: v7x
topology: tpu7x:2x2x1
jax: 0.10.0
libtpu: 0.0.40
codegen_flags: <defaults>
</compile_context>

<pallas_src>
import functools

import jax
import jax.numpy as jnp
from jax import lax
from jax.experimental import pallas as pl
from jax.experimental.pallas import tpu as pltpu

_LANE = 128
_SUBLANE = 8


# ----------------------------------------------------------------------------
# VMEM / tiling planning.
# ----------------------------------------------------------------------------
def _vmem_capacity_bytes():
    """Per-core VMEM capacity; conservative 64 MiB fallback (v7x-safe)."""
    try:
        return int(pltpu.get_tpu_info().vmem_capacity_bytes)
    except Exception:  # attribute / query not available
        return 64 << 20


def _plan(M, K, itemsize, max_tk=None):
    """Pick the K-tile `tk`, number of K blocks, and the parallel K split.

    tk is the largest 128-lane multiple whose double-buffered (M, tk) tile
    fits in ~3/4 of VMEM (minus the resident (M, M) output block + slack).
    K is NOT padded in HBM; the ragged tail is masked in-kernel.
    """
    k_lane = pl.cdiv(K, _LANE) * _LANE
    m_sub = pl.cdiv(M, _SUBLANE) * _SUBLANE
    m_sq_bytes = m_sub * (pl.cdiv(M, _LANE) * _LANE) * 4      # padded (M,M) f32

    limit = (_vmem_capacity_bytes() * 3) // 4                 # 96 MiB v5e/v6e, 48 MiB v7x
    avail = limit - 2 * m_sq_bytes - (4 << 20)                 # output blocks + slack
    per_buf = max(avail // 2, m_sub * _LANE * itemsize)        # double-buffered input
    tk = max(_LANE, (per_buf // (m_sub * itemsize)) // _LANE * _LANE)
    if max_tk is not None:
        tk = min(tk, max(_LANE, (max_tk // _LANE) * _LANE))
    tk = int(min(tk, k_lane))

    k_blocks = int(pl.cdiv(K, tk))
    # Two-way K split: lets v7x's two TensorCores share the reduction; on
    # single-TC chips it only adds one tiny extra (M, M) output block.
    n_split = 2 if k_blocks >= 2 else 1
    steps = int(pl.cdiv(k_blocks, n_split))
    return tk, k_blocks, n_split, steps, int(limit)


# ----------------------------------------------------------------------------
# Kernel 1: partial Gram matrices.  Grid = (n_split, k_steps); the output
# block (indexed by the parallel split p only) stays resident in VMEM across
# the K reduction and doubles as the accumulator.
# ----------------------------------------------------------------------------
def _partial_gram_kernel(f_ref, g_ref, *, k_total, tk, compute_dtype):
    p = pl.program_id(0)
    k = pl.program_id(1)

    @pl.when(k == 0)
    def _():
        g_ref[...] = jnp.zeros_like(g_ref)

    kb = p * pl.num_programs(1) + k      # global (unclamped) K-block index
    rem = k_total - kb * tk              # number of valid columns in this block

    def accum(f):
        if compute_dtype is not None:    # optional bf16 feed to the MXU
            f = f.astype(compute_dtype)
        # A . Aᵀ: contract the LAST dim of both operands (no explicit
        # transpose / layout copy of the (M, tk) tile).
        g_ref[...] += lax.dot_general(
            f, f, (((1,), (1,)), ((), ())),
            preferred_element_type=jnp.float32)

    @pl.when(rem >= tk)                  # full block
    def _():
        accum(f_ref[...])

    @pl.when(jnp.logical_and(rem > 0, rem < tk))   # ragged tail: mask pad lanes
    def _():
        f = f_ref[...]
        col = lax.broadcasted_iota(jnp.int32, f.shape, 1)
        accum(jnp.where(col < rem, f, jnp.zeros_like(f)))
    # rem <= 0: dead block produced by the uneven 2-way K split; skip.


def _partial_grams(f, M, K, tk, k_blocks, n_split, steps, vmem_limit,
                   compute_dtype):
    def f_index_map(p, kk):
        kb = p * steps + kk
        # Clamp dead blocks (uneven split) onto the last real block so the DMA
        # never reads out of bounds; the kernel masks their contribution away.
        return (0, jnp.minimum(kb, k_blocks - 1))

    return pl.pallas_call(
        functools.partial(_partial_gram_kernel, k_total=K, tk=tk,
                          compute_dtype=compute_dtype),
        out_shape=jax.ShapeDtypeStruct((n_split, M, M), jnp.float32),
        grid_spec=pltpu.PrefetchScalarGridSpec(
            num_scalar_prefetch=0,
            grid=(n_split, steps),
            in_specs=[pl.BlockSpec((M, tk), f_index_map)],
            out_specs=pl.BlockSpec((None, M, M), lambda p, kk: (p, 0, 0)),
        ),
        compiler_params=pltpu.CompilerParams(
            dimension_semantics=("parallel", "arbitrary"),
            vmem_limit_bytes=vmem_limit,
        ),
    )(f)


# ----------------------------------------------------------------------------
# Kernel 2a: combine partial Grams -> scaled Gram matrix (target init).
# Kernel 2b: combine partial Grams + MSE vs. target -> (1, 1) loss (forward).
# Tiny single-invocation kernels (everything fits in VMEM).
# ----------------------------------------------------------------------------
def _gram_reduce_kernel(part_ref, g_ref, *, scale, n_split):
    g = part_ref[0]
    for i in range(1, n_split):
        g = g + part_ref[i]
    g_ref[...] = g * scale


def _mse_reduce_kernel(part_ref, tgt_ref, loss_ref, *, scale, n_split):
    g = part_ref[0]
    for i in range(1, n_split):
        g = g + part_ref[i]
    diff = g * scale - tgt_ref[...].astype(jnp.float32)
    loss_ref[...] = jnp.mean(diff * diff).reshape(1, 1)


# ----------------------------------------------------------------------------
# Wrappers.
# ----------------------------------------------------------------------------
def _features(x):
    a, b, c, d = x.shape
    return x.reshape(a * b, c * d), a * b, c * d, 1.0 / float(a * b * c * d)


def _compute_dtype_for(f_dtype, M):
    # Review item: feed bf16 to the MXU for large channel counts (f32 inputs).
    return jnp.bfloat16 if (f_dtype == jnp.float32 and M >= 256) else None


def gram_matrix_pallas(x, *, max_tk=None):
    """x: NCHW (a,b,c,d) -> Gram matrix (a*b, a*b), divided by a*b*c*d."""
    f, M, K, scale = _features(x)
    itemsize = jnp.dtype(f.dtype).itemsize
    tk, k_blocks, n_split, steps, vlim = _plan(M, K, itemsize, max_tk)
    partials = _partial_grams(f, M, K, tk, k_blocks, n_split, steps, vlim,
                              _compute_dtype_for(f.dtype, M))
    return pl.pallas_call(
        functools.partial(_gram_reduce_kernel, scale=scale, n_split=n_split),
        out_shape=jax.ShapeDtypeStruct((M, M), jnp.float32),
    )(partials)


def style_loss_forward(x, target_gram, *, max_tk=None):
    """Returns (input_unchanged, mse_loss_scalar)."""
    f, M, K, scale = _features(x)
    itemsize = jnp.dtype(f.dtype).itemsize
    tk, k_blocks, n_split, steps, vlim = _plan(M, K, itemsize, max_tk)
    partials = _partial_grams(f, M, K, tk, k_blocks, n_split, steps, vlim,
                              _compute_dtype_for(f.dtype, M))
    loss = pl.pallas_call(
        functools.partial(_mse_reduce_kernel, scale=scale, n_split=n_split),
        out_shape=jax.ShapeDtypeStruct((1, 1), jnp.float32),
    )(partials, target_gram)
    # forward() returns its input unchanged; the loss is a recorded side value.
    return x, loss[0, 0]


class StyleLossPallas:
    """Pallas port of the PyTorch StyleLoss module."""

    def __init__(self, target_feature, *, max_tk=None):
        self._max_tk = max_tk
        # self.target = gram_matrix(target_feature).detach()
        self.target = gram_matrix_pallas(target_feature, max_tk=max_tk)
        self.loss = None

    def __call__(self, x):
        out, loss = style_loss_forward(x, self.target, max_tk=self._max_tk)
        self.loss = loss
        return out


# ----------------------------------------------------------------------------
# Pure-JAX reference for verification.
# ----------------------------------------------------------------------------
def _gram_ref(x):
    a, b, c, d = x.shape
    f = x.reshape(a * b, c * d).astype(jnp.float32)
    return (f @ f.T) / (a * b * c * d)


if __name__ == "__main__":
    key = jax.random.PRNGKey(0)
    k_tgt, k_in, k_odd, k_split = jax.random.split(key, 4)

    # Small NCHW shapes consistent with the module's forward: (N, C, H, W).
    target_feature = jax.random.normal(k_tgt, (2, 4, 16, 16), dtype=jnp.float32)
    x = jax.random.normal(k_in, (2, 4, 16, 16), dtype=jnp.float32)

    module = StyleLossPallas(target_feature)
    out = jax.block_until_ready(module(x))
    loss = jax.block_until_ready(module.loss)

    g_t_ref = _gram_ref(target_feature)
    loss_ref = jnp.mean((_gram_ref(x) - g_t_ref) ** 2)

    assert out.shape == x.shape and jnp.allclose(out, x)
    assert jnp.allclose(module.target, g_t_ref, atol=1e-5, rtol=1e-5)
    assert jnp.allclose(loss, loss_ref, atol=1e-5, rtol=1e-5)

    # Ragged-K path: K = 9*11 = 99 (< one 128-lane block); tail masked
    # in-kernel, no HBM pad.
    x_odd = jax.random.normal(k_odd, (2, 3, 9, 11), dtype=jnp.float32)
    m_odd = StyleLossPallas(x_odd)
    out_odd = jax.block_until_ready(m_odd(x_odd))
    assert out_odd.shape == x_odd.shape and jnp.allclose(out_odd, x_odd)
    assert jnp.allclose(m_odd.target, _gram_ref(x_odd), atol=1e-5, rtol=1e-5)
    assert jnp.allclose(m_odd.loss, 0.0, atol=1e-6)     # gram(x) vs gram(x)

    # Multi-block path: force tk=128 so K = 16*20 = 320 -> 3 K-blocks,
    # 2-way parallel split (with one dead block) + ragged tail, all at once.
    x_split_t = jax.random.normal(k_split, (2, 4, 16, 20), dtype=jnp.float32)
    x_split_i = x_split_t * 0.5 + 0.1
    m_split = StyleLossPallas(x_split_t, max_tk=128)
    out_s = jax.block_until_ready(m_split(x_split_i))
    g_ref_t = _gram_ref(x_split_t)
    l_ref = jnp.mean((_gram_ref(x_split_i) - g_ref_t) ** 2)
    assert out_s.shape == x_split_i.shape and jnp.allclose(out_s, x_split_i)
    assert jnp.allclose(m_split.target, g_ref_t, atol=1e-5, rtol=1e-5)
    assert jnp.allclose(m_split.loss, l_ref, atol=1e-5, rtol=1e-5)

    print("KERNEL_OK")
</pallas_src>

<mosaic_0001>
module attributes {stable_mosaic.version = 11 : i64} {
  func.func @_partial_gram_kernel(%arg0: i32, %arg1: i32, %arg2: memref<8x256xf32, #tpu.memory_space<vmem>>, %arg3: memref<1x8x8xf32, #tpu.memory_space<vmem>>) attributes {dimension_semantics = [#tpu.dimension_semantics<parallel>, #tpu.dimension_semantics<arbitrary>], iteration_bounds = array<i64: 1, 1>, scalar_prefetch = 0 : i64, scratch_operands = 0 : i64, tpu.core_type = #tpu.core_type<tc>, window_params = [{transform_indices = @transform_0, window_bounds = array<i64: 8, 256>}, {transform_indices = @transform_1, window_bounds = array<i64: 1, 8, 8>}]} {
    %c0_i32 = arith.constant 0 : i32
    %0 = arith.cmpi eq, %arg1, %c0_i32 : i32
    %1 = arith.extui %0 : i1 to i32
    %c0_i32_0 = arith.constant 0 : i32
    %2 = arith.cmpi ne, %1, %c0_i32_0 : i32
    scf.if %2 {
      %cst = arith.constant 0.000000e+00 : f32
      %15 = vector.broadcast %cst : f32 to vector<8x8xf32>
      %c0 = arith.constant 0 : index
      %c0_7 = arith.constant 0 : index
      %c0_8 = arith.constant 0 : index
      %16 = vector.load %arg3[%c0, %c0_7, %c0_8] : memref<1x8x8xf32, #tpu.memory_space<vmem>>, vector<1x8x8xf32>
      %17 = vector.shape_cast %16 : vector<1x8x8xf32> to vector<8x8xf32>
      %18 = vector.shape_cast %15 : vector<8x8xf32> to vector<1x8x8xf32>
      tpu.vector_store %arg3[%c0, %c0_7, %c0_8], %18 {strides = array<i32>} : memref<1x8x8xf32, #tpu.memory_space<vmem>>, vector<1x8x8xf32>,
    } else {
    }
    %c1_i32 = arith.constant 1 : i32
    %3 = arith.muli %arg0, %c1_i32 : i32
    %4 = arith.addi %3, %arg1 : i32
    %c256_i32 = arith.constant 256 : i32
    %5 = arith.muli %4, %c256_i32 : i32
    %c256_i32_1 = arith.constant 256 : i32
    %6 = arith.subi %c256_i32_1, %5 : i32
    %c256_i32_2 = arith.constant 256 : i32
    %7 = arith.cmpi sge, %6, %c256_i32_2 : i32
    %8 = arith.extui %7 : i1 to i32
    %c0_i32_3 = arith.constant 0 : i32
    %9 = arith.cmpi ne, %8, %c0_i32_3 : i32
    scf.if %9 {
      %c0 = arith.constant 0 : index
      %c0_7 = arith.constant 0 : index
      %15 = vector.load %arg2[%c0, %c0_7] : memref<8x256xf32, #tpu.memory_space<vmem>>, vector<8x256xf32>
      %c0_8 = arith.constant 0 : index
      %c0_9 = arith.constant 0 : index
      %c0_10 = arith.constant 0 : index
      %16 = vector.load %arg3[%c0_8, %c0_9, %c0_10] : memref<1x8x8xf32, #tpu.memory_space<vmem>>, vector<1x8x8xf32>
      %17 = vector.shape_cast %16 : vector<1x8x8xf32> to vector<8x8xf32>
      %cst = arith.constant dense<0.000000e+00> : vector<8x8xf32>
      %18 = tpu.matmul %15, %15, %cst {dimension_numbers = #tpu.dot_dimension_numbers<[1], [1], [0], [0], [0, 0, 1, 0], [], []>} : vector<8x256xf32>, vector<8x256xf32>, vector<8x8xf32> -> vector<8x8xf32>
      %19 = arith.addf %17, %18 : vector<8x8xf32>
      %c0_11 = arith.constant 0 : index
      %c0_12 = arith.constant 0 : index
      %c0_13 = arith.constant 0 : index
      %20 = vector.load %arg3[%c0_11, %c0_12, %c0_13] : memref<1x8x8xf32, #tpu.memory_space<vmem>>, vector<1x8x8xf32>
      %21 = vector.shape_cast %20 : vector<1x8x8xf32> to vector<8x8xf32>
      %22 = vector.shape_cast %19 : vector<8x8xf32> to vector<1x8x8xf32>
      tpu.vector_store %arg3[%c0_11, %c0_12, %c0_13], %22 {strides = array<i32>} : memref<1x8x8xf32, #tpu.memory_space<vmem>>, vector<1x8x8xf32>,
    } else {
    }
    %c0_i32_4 = arith.constant 0 : i32
    %10 = arith.cmpi sgt, %6, %c0_i32_4 : i32
    %c256_i32_5 = arith.constant 256 : i32
    %11 = arith.cmpi slt, %6, %c256_i32_5 : i32
    %12 = arith.andi %10, %11 : i1
    %13 = arith.extui %12 : i1 to i32
    %c0_i32_6 = arith.constant 0 : i32
    %14 = arith.cmpi ne, %13, %c0_i32_6 : i32
    scf.if %14 {
      %c0 = arith.constant 0 : index
      %c0_7 = arith.constant 0 : index
      %15 = vector.load %arg2[%c0, %c0_7] : memref<8x256xf32, #tpu.memory_space<vmem>>, vector<8x256xf32>
      %16 = tpu.iota {dimensions = array<i32: 1>} : vector<8x256xi32>
      %17 = vector.broadcast %6 : i32 to vector<8x256xi32>
      %18 = arith.cmpi slt, %16, %17 : vector<8x256xi32>
      %cst = arith.constant 0.000000e+00 : f32
      %19 = vector.broadcast %cst : f32 to vector<8x256xf32>
      %20 = arith.select %18, %15, %19 : vector<8x256xi1>, vector<8x256xf32>
      %c0_8 = arith.constant 0 : index
      %c0_9 = arith.constant 0 : index
      %c0_10 = arith.constant 0 : index
      %21 = vector.load %arg3[%c0_8, %c0_9, %c0_10] : memref<1x8x8xf32, #tpu.memory_space<vmem>>, vector<1x8x8xf32>
      %22 = vector.shape_cast %21 : vector<1x8x8xf32> to vector<8x8xf32>
      %cst_11 = arith.constant dense<0.000000e+00> : vector<8x8xf32>
      %23 = tpu.matmul %20, %20, %cst_11 {dimension_numbers = #tpu.dot_dimension_numbers<[1], [1], [0], [0], [0, 0, 1, 0], [], []>} : vector<8x256xf32>, vector<8x256xf32>, vector<8x8xf32> -> vector<8x8xf32>
      %24 = arith.addf %22, %23 : vector<8x8xf32>
      %c0_12 = arith.constant 0 : index
      %c0_13 = arith.constant 0 : index
      %c0_14 = arith.constant 0 : index
      %25 = vector.load %arg3[%c0_12, %c0_13, %c0_14] : memref<1x8x8xf32, #tpu.memory_space<vmem>>, vector<1x8x8xf32>
      %26 = vector.shape_cast %25 : vector<1x8x8xf32> to vector<8x8xf32>
      %27 = vector.shape_cast %24 : vector<8x8xf32> to vector<1x8x8xf32>
      tpu.vector_store %arg3[%c0_12, %c0_13, %c0_14], %27 {strides = array<i32>} : memref<1x8x8xf32, #tpu.memory_space<vmem>>, vector<1x8x8xf32>,
    } else {
    }
    return
  }
  func.func @transform_0(%arg0: i32, %arg1: i32) -> (i32, i32) {
    %c1_i32 = arith.constant 1 : i32
    %0 = arith.muli %arg0, %c1_i32 : i32
    %1 = arith.addi %0, %arg1 : i32
    %c0_i32 = arith.constant 0 : i32
    %2 = arith.minsi %1, %c0_i32 : i32
    %c0_i32_0 = arith.constant 0 : i32
    %c0_i32_1 = arith.constant 0 : i32
    return %c0_i32_0, %2 : i32, i32
  }
  func.func @transform_1(%arg0: i32, %arg1: i32) -> (i32, i32, i32) {
    %c0_i32 = arith.constant 0 : i32
    %c0_i32_0 = arith.constant 0 : i32
    %c0_i32_1 = arith.constant 0 : i32
    return %arg0, %c0_i32, %c0_i32_0 : i32, i32, i32
  }
}

</mosaic_0001>

<llo_original>
// kernel: tpu_custom_call.1
$region0: #{tpu_custom_call.1}
  #allocation0 [shape = 'u32[]', space=smem, size = 0x4, offset = 0x4, fixed_abs, tag = 'smem constant byte address 0x4 - core index']
  #allocation1 [shape = 'u32[144,128]{1,0:T(1,128)}', space=vmem, size = 0x12000, scoped, tag = 'internal scratch']
  %s0 = inlined_call_operand.hbm [shape: f32[8,256], index: 0, kind: input, shape index: {}]
  %s1 = inlined_call_operand.hbm [shape: f32[1,8,8], index: 1, kind: output, shape index: {}]
  %s2 = sld [smem:[#allocation0]]
  $region30: #{tpu_custom_call.1} parent=0
    _
  %s4 = ssub.s32 1, %s2
  %s5 = scalar_select 0, %s4, %s2
  $region1: #{tpu_custom_call.1} parent=0
    #allocation2 [shape = 'u8[8192]{0}', space=vmem, size = 0x2000, scoped, tag = 'input window, operand 0, single buffered']
    #allocation3 [shape = 's32[1]{0}', space=sflag, size = 0x4, scoped, tag = 'scoped memory for tpu_custom_call.1']
    #allocation4 [shape = 's32[1]{0}', space=sflag, size = 0x4, scoped, tag = 'scoped memory for tpu_custom_call.1']
    #allocation5 [shape = 'u8[4096]{0}', space=vmem, size = 0x1000, scoped, tag = 'output window, operand 0, single buffered']
    %6 = vsyncpa [#allocation3], 0
    %7 = vsyncpa [#allocation4], 0
    // Predicated region
    $region2: #{tpu_custom_call.1} parent=1 // pred_check
      _
    $region3: #{tpu_custom_call.1} parent=1 // pred_check_branch
      %9 = sbr.rel (0) target = $region5
    $region4: #{tpu_custom_call.1} parent=1 // pred_region
      %s10 = sadd.s32 0, 0
      %p11 = scmp.lt.s32.totalorder %s10, 0
      %s12 = scalar_select %p11, %s10, 0
      %s13 = smul.u32 2, %s12
      %s15 = ssub.s32 256, 256
      %16 = vsyncadd [#allocation3], %s15
      %s17 = smul.addr %s13, 128
      %s18 = scalar_lea.hbm %s0, %s17
      %s20 = sshll.u32 [#allocation2], 4
      %s21 = int_to_ptr.vmem [resolvable:$true] %s20
      %23 = dma.hbm_to_vmem [thread:$0]  %s18, 256, %s21, [#allocation3]
    $region5: #{tpu_custom_call.1} parent=1 // pred_fallthru
      _
    // Predicated region
    $region6: #{tpu_custom_call.1} parent=1 // pred_check
      _
    $region7: #{tpu_custom_call.1} parent=1 // pred_check_branch
      %25 = sbr.rel (0) target = $region9
    $region8: #{tpu_custom_call.1} parent=1 // pred_region
      %26 = dma.done [#allocation3], 256
    $region9: #{tpu_custom_call.1} parent=1 // pred_fallthru
      _
    %s27 = sadd.s32 0, 0
    %p28 = scmp.lt.s32.totalorder %s27, 0
    %s29 = scalar_select %p28, %s27, 0
    %s30 = smul.u32 2, %s29
    %p31 = scmp.eq.s32.totalorder 0, 0
    // Predicated region
    $region10: #{tpu_custom_call.1} parent=1 // pred_check
      %p32 = pneg %p31
    $region11: #{tpu_custom_call.1} parent=1 // pred_check_branch
      %34 = sbr.rel (%p32) target = $region13
    $region12: #{tpu_custom_call.1} parent=1 // pred_region
      %vm35 = vcmask 64512
      %36 = vst.msk [vmem:[#allocation5] sm:$0xff] %vm35, 0.0
    $region13: #{tpu_custom_call.1} parent=1 // pred_fallthru
      _
    %s37 = sadd.s32 0, 0
    %s38 = smul.u32 %s37, 256
    %s39 = ssub.s32 256, %s38
    %p40 = scmp.ge.s32.totalorder %s39, 256
    // Predicated region
    $region14: #{tpu_custom_call.1} parent=1 // pred_check
      %p41 = pneg %p40
    $region15: #{tpu_custom_call.1} parent=1 // pred_check_branch
      %43 = sbr.rel (%p41) target = $region17
    $region16: #{tpu_custom_call.1} parent=1 // pred_region
      %v44 = vld [vmem:[#allocation2] sm:$0xff]
      %v45 = vld [vmem:[#allocation2 + $0x8] sm:$0xff]
      %v46 = vld [vmem:[#allocation5] sm:$0xff]
      %47 = vmatprep.subr.mxu0 %v45
      %48 = vmatpush1.xpose.msra.mxu0 %v44
      %49 = vmatprep.subr.mxu0 0.0
      %50 = vmatpush1.xpose.msra.mxu0 0.0
      %51 = vmatprep.subr.mxu0 0.0
      %52 = vmatpush1.xpose.msra.mxu0 0.0
      %53 = vmatprep.subr.mxu0 0.0
      %54 = vmatpush1.xpose.msra.mxu0 0.0
      %55 = vmatprep.subr.mxu0 0.0
      %56 = vmatpush1.xpose.msra.mxu0 0.0
      %57 = vmatprep.subr.mxu0 0.0
      %58 = vmatpush1.xpose.msra.mxu0 0.0
      %59 = vmatprep.subr.mxu0 0.0
      %60 = vmatpush1.xpose.msra.mxu0 0.0
      %61 = vmatprep.subr.mxu0 0.0
      %62 = vmatpush1.xpose.msra.mxu0 0.0
      %63 = vmatprep.subr.mxu0 0.0
      %64 = vmatpush1.xpose.msra.mxu0 0.0
      %65 = vmatprep.subr.mxu0 0.0
      %66 = vmatpush1.xpose.msra.mxu0 0.0
      %67 = vmatprep.subr.mxu0 0.0
      %68 = vmatpush1.xpose.msra.mxu0 0.0
      %69 = vmatprep.subr.mxu0 0.0
      %70 = vmatpush1.xpose.msra.mxu0 0.0
      %71 = vmatprep.subr.mxu0 0.0
      %72 = vmatpush1.xpose.msra.mxu0 0.0
      %73 = vmatprep.subr.mxu0 0.0
      %74 = vmatpush1.xpose.msra.mxu0 0.0
      %75 = vmatprep.subr.mxu0 0.0
      %76 = vmatpush1.xpose.msra.mxu0 0.0
      %77 = vmatprep.subr.mxu0 0.0
      %78 = vmatpush1.xpose.msra.mxu0 0.0
      %79 = vmatprep.subr.mxu0 0.0
      %80 = vmatpush1.xpose.msra.mxu0 0.0
      %81 = vmatprep.subr.mxu0 0.0
      %82 = vmatpush1.xpose.msra.mxu0 0.0
      %83 = vmatprep.subr.mxu0 0.0
      %84 = vmatpush1.xpose.msra.mxu0 0.0
      %85 = vmatprep.subr.mxu0 0.0
      %86 = vmatpush1.xpose.msra.mxu0 0.0
      %87 = vmatprep.subr.mxu0 0.0
      %88 = vmatpush1.xpose.msra.mxu0 0.0
      %89 = vmatprep.subr.mxu0 0.0
      %90 = vmatpush1.xpose.msra.mxu0 0.0
      %91 = vmatprep.subr.mxu0 0.0
      %92 = vmatpush1.xpose.msra.mxu0 0.0
      %93 = vmatprep.subr.mxu0 0.0
      %94 = vmatpush1.xpose.msra.mxu0 0.0
      %95 = vmatprep.subr.mxu0 0.0
      %96 = vmatpush1.xpose.msra.mxu0 0.0
      %97 = vmatprep.subr.mxu0 0.0
      %98 = vmatpush1.xpose.msra.mxu0 0.0
      %99 = vmatprep.subr.mxu0 0.0
      %100 = vmatpush1.xpose.msra.mxu0 0.0
      %101 = vmatprep.subr.mxu0 0.0
      %102 = vmatpush1.xpose.msra.mxu0 0.0
      %103 = vmatprep.subr.mxu0 0.0
      %104 = vmatpush1.xpose.msra.mxu0 0.0
      %105 = vmatprep.subr.mxu0 0.0
      %106 = vmatpush1.xpose.msra.mxu0 0.0
      %107 = vmatprep.subr.mxu0 0.0
      %108 = vmatpush1.xpose.msra.mxu0 0.0
      %109 = vmatprep.subr.mxu0 0.0
      %110 = vmatpush1.xpose.msra.mxu0 0.0
      %111 = vmatprep.mubr.f32.mxu0 %v45
      %112 = vmatmul.mubr.f32.gmra.mrb[0].mxu0 %v44
      %v113 = vpop.f32.mrb[0].mxu0
      %v114 = vadd.f32 0.0, %v113
      %v115 = vpop.f32.mrb[0].mxu0
      %116 = vdwg.mxu0
      %v117 = vadd.f32 %v46, %v114
      %vm118 = vcmask 64512
      %119 = vst.msk [vmem:[#allocation5] sm:$0xff] %vm118, %v117
    $region17: #{tpu_custom_call.1} parent=1 // pred_fallthru
      _
    %p120 = scmp.gt.s32.totalorder %s39, 0
    %p121 = scmp.lt.s32.totalorder %s39, 256
    %p122 = pnand %p120, %p121
    %p123 = pneg %p122
    // Predicated region
    $region18: #{tpu_custom_call.1} parent=1 // pred_check
      _
    $region19: #{tpu_custom_call.1} parent=1 // pred_check_branch
      %125 = sbr.rel (%p122) target = $region21
    $region20: #{tpu_custom_call.1} parent=1 // pred_region
      %v126 = vld [vmem:[#allocation2] sm:$0xff]
      %v127 = vld [vmem:[#allocation2 + $0x8] sm:$0xff]
      %v128 = vlaneseq
      %v129 = vand.u32 %v128, 127
      %v130 = vadd.s32 %v129, 128
      %v131 = vstv %s39
      %vm132 = vcmp.lt.s32.totalorder %v129, %v131
      %vm133 = vcmp.lt.s32.totalorder %v130, %v131
      %v134 = vsel %vm132, %v126, 0.0
      %v135 = vsel %vm133, %v127, 0.0
      %v136 = vld [vmem:[#allocation5] sm:$0xff]
      %137 = vmatprep.subr.mxu0 %v135
      %138 = vmatpush1.xpose.msra.mxu0 %v134
      %139 = vmatprep.subr.mxu0 0.0
      %140 = vmatpush1.xpose.msra.mxu0 0.0
      %141 = vmatprep.subr.mxu0 0.0
      %142 = vmatpush1.xpose.msra.mxu0 0.0
      %143 = vmatprep.subr.mxu0 0.0
      %144 = vmatpush1.xpose.msra.mxu0 0.0
      %145 = vmatprep.subr.mxu0 0.0
      %146 = vmatpush1.xpose.msra.mxu0 0.0
      %147 = vmatprep.subr.mxu0 0.0
      %148 = vmatpush1.xpose.msra.mxu0 0.0
      %149 = vmatprep.subr.mxu0 0.0
      %150 = vmatpush1.xpose.msra.mxu0 0.0
      %151 = vmatprep.subr.mxu0 0.0
      %152 = vmatpush1.xpose.msra.mxu0 0.0
      %153 = vmatprep.subr.mxu0 0.0
      %154 = vmatpush1.xpose.msra.mxu0 0.0
      %155 = vmatprep.subr.mxu0 0.0
      %156 = vmatpush1.xpose.msra.mxu0 0.0
      %157 = vmatprep.subr.mxu0 0.0
      %158 = vmatpush1.xpose.msra.mxu0 0.0
      %159 = vmatprep.subr.mxu0 0.0
      %160 = vmatpush1.xpose.msra.mxu0 0.0
      %161 = vmatprep.subr.mxu0 0.0
      %162 = vmatpush1.xpose.msra.mxu0 0.0
      %163 = vmatprep.subr.mxu0 0.0
      %164 = vmatpush1.xpose.msra.mxu0 0.0
      %165 = vmatprep.subr.mxu0 0.0
      %166 = vmatpush1.xpose.msra.mxu0 0.0
      %167 = vmatprep.subr.mxu0 0.0
      %168 = vmatpush1.xpose.msra.mxu0 0.0
      %169 = vmatprep.subr.mxu0 0.0
      %170 = vmatpush1.xpose.msra.mxu0 0.0
      %171 = vmatprep.subr.mxu0 0.0
      %172 = vmatpush1.xpose.msra.mxu0 0.0
      %173 = vmatprep.subr.mxu0 0.0
      %174 = vmatpush1.xpose.msra.mxu0 0.0
      %175 = vmatprep.subr.mxu0 0.0
      %176 = vmatpush1.xpose.msra.mxu0 0.0
      %177 = vmatprep.subr.mxu0 0.0
      %178 = vmatpush1.xpose.msra.mxu0 0.0
      %179 = vmatprep.subr.mxu0 0.0
      %180 = vmatpush1.xpose.msra.mxu0 0.0
      %181 = vmatprep.subr.mxu0 0.0
      %182 = vmatpush1.xpose.msra.mxu0 0.0
      %183 = vmatprep.subr.mxu0 0.0
      %184 = vmatpush1.xpose.msra.mxu0 0.0
      %185 = vmatprep.subr.mxu0 0.0
      %186 = vmatpush1.xpose.msra.mxu0 0.0
      %187 = vmatprep.subr.mxu0 0.0
      %188 = vmatpush1.xpose.msra.mxu0 0.0
      %189 = vmatprep.subr.mxu0 0.0
      %190 = vmatpush1.xpose.msra.mxu0 0.0
      %191 = vmatprep.subr.mxu0 0.0
      %192 = vmatpush1.xpose.msra.mxu0 0.0
      %193 = vmatprep.subr.mxu0 0.0
      %194 = vmatpush1.xpose.msra.mxu0 0.0
      %195 = vmatprep.subr.mxu0 0.0
      %196 = vmatpush1.xpose.msra.mxu0 0.0
      %197 = vmatprep.subr.mxu0 0.0
      %198 = vmatpush1.xpose.msra.mxu0 0.0
      %199 = vmatprep.subr.mxu0 0.0
      %200 = vmatpush1.xpose.msra.mxu0 0.0
      %201 = vmatprep.mubr.f32.mxu0 %v135
      %202 = vmatmul.mubr.f32.gmra.mrb[0].mxu0 %v134
      %v203 = vpop.f32.mrb[0].mxu0
      %v204 = vadd.f32 0.0, %v203
      %v205 = vpop.f32.mrb[0].mxu0
      %206 = vdwg.mxu0
      %v207 = vadd.f32 %v136, %v204
      %vm208 = vcmask 64512
      %209 = vst.msk [vmem:[#allocation5] sm:$0xff] %vm208, %v207
    $region21: #{tpu_custom_call.1} parent=1 // pred_fallthru
      _
    // Predicated region
    $region22: #{tpu_custom_call.1} parent=1 // pred_check
      _
    $region23: #{tpu_custom_call.1} parent=1 // pred_check_branch
      %211 = sbr.rel (0) target = $region25
    $region24: #{tpu_custom_call.1} parent=1 // pred_region
      %s213 = ssub.s32 128, 128
      %214 = vsyncadd [#allocation4], %s213
      %s216 = sshll.u32 [#allocation5], 4
      %s217 = int_to_ptr.vmem [resolvable:$true] %s216
      %219 = dma.vmem_to_hbm [thread:$0]  %s217, 128, %s1, [#allocation4]
    $region25: #{tpu_custom_call.1} parent=1 // pred_fallthru
      _
    // Predicated region
    $region26: #{tpu_custom_call.1} parent=1 // pred_check
      _
    $region27: #{tpu_custom_call.1} parent=1 // pred_check_branch
      %221 = sbr.rel (0) target = $region29
    $region28: #{tpu_custom_call.1} parent=1 // pred_region
      %222 = dma.done [#allocation4], 128
    $region29: #{tpu_custom_call.1} parent=1 // pred_fallthru
      _
    %223 = vsyncpa [#allocation3], 1
    %224 = vsyncpa [#allocation4], 1

</llo_original>
